<compile_context>
chip_gen: v5e
topology: v5e:2x2
jax: 0.10.0
libtpu: 0.0.40
codegen_flags: <defaults>
</compile_context>

<pallas_src>
import functools

import jax
import jax.numpy as jnp
from jax.experimental import pallas as pl
from jax.experimental.pallas import tpu as pltpu


def _round_up(v, m):
    return -(-v // m) * m


# ----------------------------------------------------------------------------
# Fused kernel: one grid step == one MobiusGraphConv layer.
#   act ∈ o_ref (resident across the layer grid axis)
#   s        = [P_r; P_i] @ act                      (2N, B*F)
#   act_new  = s[:N] @ Wr_bd - s[N:] @ Wi_bd + bias  (N, B*F)
# ----------------------------------------------------------------------------
def _fused_mobius_kernel(n_nodes, x_ref, p_ref, wr_ref, wi_ref, b_ref, o_ref):
    layer = pl.program_id(0)

    @pl.when(layer == 0)
    def _():
        o_ref[...] = x_ref[...]                       # load input slab once

    s = jnp.dot(p_ref[0], o_ref[...], preferred_element_type=jnp.float32)   # (2N, B*F)
    y = (jnp.dot(s[:n_nodes], wr_ref[0], preferred_element_type=jnp.float32)
         - jnp.dot(s[n_nodes:], wi_ref[0], preferred_element_type=jnp.float32)
         + b_ref[0])
    o_ref[...] = y.astype(o_ref.dtype)                # activation stays in VMEM


def mobius_gcn_forward(x, eigen_vec, params):
    """Full MobiusGCN stack in one pallas_call. x: (B, N, Fin0) -> (B, N, Fout_last)."""
    B, N, f_in0 = x.shape
    L = len(params)
    feat_dims = [f_in0] + [p["w_r"].shape[1] for p in params]
    max_f = max(feat_dims)

    # Pad the per-layer feature dim so B * F_pad is a multiple of 128 (lane dense).
    lane_total = _round_up(B * max_f, 128)
    f_pad = lane_total // B if lane_total % B == 0 else _round_up(max_f, 128)
    lane = B * f_pad

    u = eigen_vec.astype(jnp.float32)

    # Activation slab: batch folded into lanes -> (N, B*F_pad).
    xp = jnp.zeros((B, N, f_pad), jnp.float32).at[..., :f_in0].set(x.astype(jnp.float32))
    x_slab = xp.transpose(1, 0, 2).reshape(N, lane)

    eye_b = jnp.eye(B, dtype=jnp.float32)
    p_all, wr_all, wi_all, b_all = [], [], [], []
    for p in params:
        fin, fout = p["w_r"].shape
        # P = U diag(g) Uᵀ  (real / imaginary parts), batch independent.
        p_r = jnp.dot(u * p["g_r"].reshape(1, -1), u.T)
        p_i = jnp.dot(u * p["g_i"].reshape(1, -1), u.T)
        p_all.append(jnp.concatenate([p_r, p_i], axis=0))                 # (2N, N)
        w_r = jnp.zeros((f_pad, f_pad), jnp.float32).at[:fin, :fout].set(p["w_r"])
        w_i = jnp.zeros((f_pad, f_pad), jnp.float32).at[:fin, :fout].set(p["w_i"])
        wr_all.append(jnp.kron(eye_b, w_r))                               # (lane, lane)
        wi_all.append(jnp.kron(eye_b, w_i))
        bias = jnp.zeros((1, f_pad), jnp.float32).at[:, :fout].set(p["bias"])
        b_all.append(jnp.tile(bias, (1, B)))                              # (1, lane)
    p_all = jnp.stack(p_all)    # (L, 2N, N)
    wr_all = jnp.stack(wr_all)  # (L, lane, lane)
    wi_all = jnp.stack(wi_all)  # (L, lane, lane)
    b_all = jnp.stack(b_all)    # (L, 1, lane)

    out_slab = pl.pallas_call(
        functools.partial(_fused_mobius_kernel, N),
        out_shape=jax.ShapeDtypeStruct((N, lane), jnp.float32),
        grid=(L,),
        in_specs=[
            pl.BlockSpec((N, lane), lambda l: (0, 0)),           # input slab (constant)
            pl.BlockSpec((1, 2 * N, N), lambda l: (l, 0, 0)),    # [P_r; P_i] per layer
            pl.BlockSpec((1, lane, lane), lambda l: (l, 0, 0)),  # kron(I_B, W_r)
            pl.BlockSpec((1, lane, lane), lambda l: (l, 0, 0)),  # kron(I_B, W_i)
            pl.BlockSpec((1, 1, lane), lambda l: (l, 0, 0)),     # bias
        ],
        out_specs=pl.BlockSpec((N, lane), lambda l: (0, 0)),     # resident activation
        compiler_params=pltpu.CompilerParams(dimension_semantics=("arbitrary",)),
    )(x_slab, p_all, wr_all, wi_all, b_all)

    f_out_last = params[-1]["w_r"].shape[1]
    return out_slab.reshape(N, B, f_pad).transpose(1, 0, 2)[..., :f_out_last]


# ----------------------------------------------------------------------------
# Parameter construction (deterministic) + plain-JAX complex reference.
# ----------------------------------------------------------------------------
def init_layer(key, fin, fout, eigen_val):
    k_wr, k_wi, k_m = jax.random.split(key, 3)
    scale = 1.0 / jnp.sqrt(jnp.float32(fin))
    w_r = scale * jax.random.normal(k_wr, (fin, fout), jnp.float32)
    w_i = scale * jax.random.normal(k_wi, (fin, fout), jnp.float32)
    bias = jnp.zeros((1, fout), jnp.float32)
    # Möbius coefficients a, b, c, d ∈ ℂ (d offset away from 0 for conditioning).
    m = 0.1 * jax.random.normal(k_m, (8,), jnp.float32)
    a = m[0] + 1j * m[1]
    b = m[2] + 1j * m[3]
    c = m[4] + 1j * m[5]
    d = (m[6] + 2.0) + 1j * m[7]
    lam = eigen_val.astype(jnp.complex64)
    g = (a * lam + b) / (c * lam + d)                   # (N,) complex filter response
    g_r = jnp.real(g).astype(jnp.float32).reshape(-1, 1)
    g_i = jnp.imag(g).astype(jnp.float32).reshape(-1, 1)
    return dict(w_r=w_r, w_i=w_i, bias=bias, g_r=g_r, g_i=g_i)


def mobius_gcn_reference(x, eigen_vec, params):
    """Plain-JAX complex reference for correctness checking."""
    out = x
    u = eigen_vec.astype(jnp.complex64)
    for p in params:
        g = (p["g_r"] + 1j * p["g_i"]).astype(jnp.complex64)       # (N,1)
        w = (p["w_r"] + 1j * p["w_i"]).astype(jnp.complex64)       # (Fin,Fout)
        xs = jnp.einsum("nm,bmf->bnf", u.T, out.astype(jnp.complex64))
        filt = g[None, :, :] * xs
        t = jnp.einsum("nm,bmf->bnf", u, filt)
        out = (jnp.real(jnp.einsum("bnf,fo->bno", t, w)) + p["bias"]).astype(jnp.float32)
    return out


if __name__ == "__main__":
    # Small, module-consistent shapes: B=2 poses, N=16 joints, coords (2 -> 3),
    # hid_dim=32, num_layers=2 intermediate layers.
    B, N = 2, 16
    hid_dim, num_layers = 32, 2
    coords_dim = (2, 3)

    key = jax.random.PRNGKey(0)
    k_graph, k_x, k_params = jax.random.split(key, 3)

    # Deterministic synthetic graph spectrum: eigendecomposition of a symmetric matrix.
    a_sym = jax.random.normal(k_graph, (N, N), jnp.float32)
    a_sym = 0.5 * (a_sym + a_sym.T)
    eigen_val, eigen_vec = jnp.linalg.eigh(a_sym)          # (N,), (N, N)
    eigen_val = eigen_val.astype(jnp.float32)
    eigen_vec = eigen_vec.astype(jnp.float32)

    # Layer dims: input (2->hid), num_layers x (hid->hid), output (hid->3).
    dims = [coords_dim[0]] + [hid_dim] * (num_layers + 1) + [coords_dim[1]]
    layer_keys = jax.random.split(k_params, len(dims) - 1)
    params = [init_layer(layer_keys[i], dims[i], dims[i + 1], eigen_val)
              for i in range(len(dims) - 1)]

    x = jax.random.normal(k_x, (B, N, coords_dim[0]), jnp.float32)

    out = mobius_gcn_forward(x, eigen_vec, params)
    out = jax.block_until_ready(out)

    ref = mobius_gcn_reference(x, eigen_vec, params)
    assert out.shape == (B, N, coords_dim[1]), out.shape
    err = float(jnp.max(jnp.abs(out - ref)))
    assert jnp.allclose(out, ref, atol=1e-3, rtol=1e-3), err

    print("KERNEL_OK")
</pallas_src>

<mosaic_0001>
module attributes {stable_mosaic.version = 11 : i64} {
  func.func @_fused_mobius_kernel(%arg0: i32, %arg1: memref<16x128xf32, #tpu.memory_space<vmem>>, %arg2: memref<1x32x16xf32, #tpu.memory_space<vmem>>, %arg3: memref<1x128x128xf32, #tpu.memory_space<vmem>>, %arg4: memref<1x128x128xf32, #tpu.memory_space<vmem>>, %arg5: memref<1x1x128xf32, #tpu.memory_space<vmem>>, %arg6: memref<16x128xf32, #tpu.memory_space<vmem>>) attributes {dimension_semantics = [#tpu.dimension_semantics<arbitrary>], iteration_bounds = array<i64: 4>, scalar_prefetch = 0 : i64, scratch_operands = 0 : i64, tpu.core_type = #tpu.core_type<tc>, window_params = [{pipeline_mode = #tpu.pipeline_mode<synchronous>, transform_indices = @transform_0, window_bounds = array<i64: 16, 128>}, {transform_indices = @transform_1, window_bounds = array<i64: 1, 32, 16>}, {transform_indices = @transform_2, window_bounds = array<i64: 1, 128, 128>}, {transform_indices = @transform_3, window_bounds = array<i64: 1, 128, 128>}, {transform_indices = @transform_4, window_bounds = array<i64: 1, 1, 128>}, {pipeline_mode = #tpu.pipeline_mode<synchronous>, transform_indices = @transform_5, window_bounds = array<i64: 16, 128>}]} {
    %c0_i32 = arith.constant 0 : i32
    %0 = arith.cmpi eq, %arg0, %c0_i32 : i32
    %1 = arith.extui %0 : i1 to i32
    %c0_i32_0 = arith.constant 0 : i32
    %2 = arith.cmpi ne, %1, %c0_i32_0 : i32
    scf.if %2 {
      %c0_18 = arith.constant 0 : index
      %c0_19 = arith.constant 0 : index
      %21 = vector.load %arg1[%c0_18, %c0_19] : memref<16x128xf32, #tpu.memory_space<vmem>>, vector<16x128xf32>
      %c0_20 = arith.constant 0 : index
      %c0_21 = arith.constant 0 : index
      %22 = vector.load %arg6[%c0_20, %c0_21] : memref<16x128xf32, #tpu.memory_space<vmem>>, vector<16x128xf32>
      tpu.vector_store %arg6[%c0_20, %c0_21], %21 {strides = array<i32>} : memref<16x128xf32, #tpu.memory_space<vmem>>, vector<16x128xf32>,
    } else {
    }
    %c0 = arith.constant 0 : index
    %c0_1 = arith.constant 0 : index
    %c0_2 = arith.constant 0 : index
    %3 = vector.load %arg2[%c0, %c0_1, %c0_2] : memref<1x32x16xf32, #tpu.memory_space<vmem>>, vector<1x32x16xf32>
    %4 = vector.shape_cast %3 : vector<1x32x16xf32> to vector<32x16xf32>
    %c0_3 = arith.constant 0 : index
    %c0_4 = arith.constant 0 : index
    %5 = vector.load %arg6[%c0_3, %c0_4] : memref<16x128xf32, #tpu.memory_space<vmem>>, vector<16x128xf32>
    %cst = arith.constant dense<0.000000e+00> : vector<32x128xf32>
    %6 = tpu.matmul %4, %5, %cst {dimension_numbers = #tpu.dot_dimension_numbers<[1], [0], [0], [1], [0, 0, 1, 1], [], []>} : vector<32x16xf32>, vector<16x128xf32>, vector<32x128xf32> -> vector<32x128xf32>
    %7 = vector.extract_strided_slice %6 {offsets = [0, 0], sizes = [16, 128], strides = [1, 1]} : vector<32x128xf32> to vector<16x128xf32>
    %c0_5 = arith.constant 0 : index
    %c0_6 = arith.constant 0 : index
    %c0_7 = arith.constant 0 : index
    %8 = vector.load %arg3[%c0_5, %c0_6, %c0_7] : memref<1x128x128xf32, #tpu.memory_space<vmem>>, vector<1x128x128xf32>
    %9 = vector.shape_cast %8 : vector<1x128x128xf32> to vector<128x128xf32>
    %cst_8 = arith.constant dense<0.000000e+00> : vector<16x128xf32>
    %10 = tpu.matmul %7, %9, %cst_8 {dimension_numbers = #tpu.dot_dimension_numbers<[1], [0], [0], [1], [0, 0, 1, 1], [], []>} : vector<16x128xf32>, vector<128x128xf32>, vector<16x128xf32> -> vector<16x128xf32>
    %11 = vector.extract_strided_slice %6 {offsets = [16, 0], sizes = [16, 128], strides = [1, 1]} : vector<32x128xf32> to vector<16x128xf32>
    %c0_9 = arith.constant 0 : index
    %c0_10 = arith.constant 0 : index
    %c0_11 = arith.constant 0 : index
    %12 = vector.load %arg4[%c0_9, %c0_10, %c0_11] : memref<1x128x128xf32, #tpu.memory_space<vmem>>, vector<1x128x128xf32>
    %13 = vector.shape_cast %12 : vector<1x128x128xf32> to vector<128x128xf32>
    %cst_12 = arith.constant dense<0.000000e+00> : vector<16x128xf32>
    %14 = tpu.matmul %11, %13, %cst_12 {dimension_numbers = #tpu.dot_dimension_numbers<[1], [0], [0], [1], [0, 0, 1, 1], [], []>} : vector<16x128xf32>, vector<128x128xf32>, vector<16x128xf32> -> vector<16x128xf32>
    %15 = arith.subf %10, %14 : vector<16x128xf32>
    %c0_13 = arith.constant 0 : index
    %c0_14 = arith.constant 0 : index
    %c0_15 = arith.constant 0 : index
    %16 = vector.load %arg5[%c0_13, %c0_14, %c0_15] : memref<1x1x128xf32, #tpu.memory_space<vmem>>, vector<1x1x128xf32>
    %17 = vector.shape_cast %16 : vector<1x1x128xf32> to vector<1x128xf32>
    %18 = vector.broadcast %17 : vector<1x128xf32> to vector<16x128xf32>
    %19 = arith.addf %15, %18 : vector<16x128xf32>
    %c0_16 = arith.constant 0 : index
    %c0_17 = arith.constant 0 : index
    %20 = vector.load %arg6[%c0_16, %c0_17] : memref<16x128xf32, #tpu.memory_space<vmem>>, vector<16x128xf32>
    tpu.vector_store %arg6[%c0_16, %c0_17], %19 {strides = array<i32>} : memref<16x128xf32, #tpu.memory_space<vmem>>, vector<16x128xf32>,
    return
  }
  func.func @transform_0(%arg0: i32) -> (i32, i32) {
    %c0_i32 = arith.constant 0 : i32
    %c0_i32_0 = arith.constant 0 : i32
    %c0_i32_1 = arith.constant 0 : i32
    return %c0_i32, %c0_i32_0 : i32, i32
  }
  func.func @transform_1(%arg0: i32) -> (i32, i32, i32) {
    %c0_i32 = arith.constant 0 : i32
    %c0_i32_0 = arith.constant 0 : i32
    %c0_i32_1 = arith.constant 0 : i32
    return %arg0, %c0_i32, %c0_i32_0 : i32, i32, i32
  }
  func.func @transform_2(%arg0: i32) -> (i32, i32, i32) {
    %c0_i32 = arith.constant 0 : i32
    %c0_i32_0 = arith.constant 0 : i32
    %c0_i32_1 = arith.constant 0 : i32
    return %arg0, %c0_i32, %c0_i32_0 : i32, i32, i32
  }
  func.func @transform_3(%arg0: i32) -> (i32, i32, i32) {
    %c0_i32 = arith.constant 0 : i32
    %c0_i32_0 = arith.constant 0 : i32
    %c0_i32_1 = arith.constant 0 : i32
    return %arg0, %c0_i32, %c0_i32_0 : i32, i32, i32
  }
  func.func @transform_4(%arg0: i32) -> (i32, i32, i32) {
    %c0_i32 = arith.constant 0 : i32
    %c0_i32_0 = arith.constant 0 : i32
    %c0_i32_1 = arith.constant 0 : i32
    return %arg0, %c0_i32, %c0_i32_0 : i32, i32, i32
  }
  func.func @transform_5(%arg0: i32) -> (i32, i32) {
    %c0_i32 = arith.constant 0 : i32
    %c0_i32_0 = arith.constant 0 : i32
    %c0_i32_1 = arith.constant 0 : i32
    return %c0_i32, %c0_i32_0 : i32, i32
  }
}

</mosaic_0001>

<llo_original>
// kernel: tpu_custom_call.1
$region0: #{tpu_custom_call.1}
  #allocation0 [shape = 'u32[]', space=smem, size = 0x4, offset = 0x4, fixed_abs, tag = 'smem constant byte address 0x4 - core index']
  #allocation1 [shape = 'u32[72,128]{1,0:T(1,128)}', space=vmem, size = 0x9000, scoped, tag = 'internal scratch']
  %s0 = inlined_call_operand.vmem [shape: f32[16,128], index: 0, kind: input, shape index: {}]
  %s1 = inlined_call_operand.vmem [shape: f32[4,32,16], index: 1, kind: input, shape index: {}]
  %s2 = inlined_call_operand.hbm [shape: f32[4,128,128], index: 2, kind: input, shape index: {}]
  %s3 = inlined_call_operand.hbm [shape: f32[4,128,128], index: 3, kind: input, shape index: {}]
  %s4 = inlined_call_operand.vmem [shape: f32[4,1,128], index: 4, kind: input, shape index: {}]
  %s5 = inlined_call_operand.hbm [shape: f32[16,128], index: 5, kind: output, shape index: {}]
  %s6 = sld [smem:[#allocation0]]
  $region65: #{tpu_custom_call.1} parent=0
    _
  %s8 = ssub.s32 1, %s6
  %s9 = scalar_select 0, %s8, %s6
  $region1: #{tpu_custom_call.1} parent=0
    #allocation2 [shape = 'u8[131072]{0}', space=vmem, size = 0x20000, scoped, tag = 'input window, operand 2']
    #allocation3 [shape = 's32[2]{0}', space=sflag, size = 0x8, scoped, tag = 'scoped memory for tpu_custom_call.1']
    #allocation4 [shape = 's32[2]{0}', space=sflag, size = 0x8, scoped, tag = 'scoped memory for tpu_custom_call.1']
    #allocation5 [shape = 'u8[131072]{0}', space=vmem, size = 0x20000, scoped, tag = 'input window, operand 3']
    #allocation6 [shape = 's32[2]{0}', space=sflag, size = 0x8, scoped, tag = 'scoped memory for tpu_custom_call.1']
    #allocation7 [shape = 'u8[8192]{0}', space=vmem, size = 0x2000, scoped, tag = 'output window, operand 0, single buffered']
    %10 = vsyncpa [#allocation3], 0
    %s11 = scalar_lea.sflag [#allocation3], 1
    %12 = vsyncpa %s11, 0
    %13 = vsyncpa [#allocation6], 0
    %s14 = scalar_lea.sflag [#allocation6], 1
    %15 = vsyncpa %s14, 0
    %16 = vsyncpa [#allocation4], 0
    loop: start=0, step=1, limit=6
    $region2: #{tpu_custom_call.1} parent=1 // loop_pre_header
      _
    $region3: #{tpu_custom_call.1} parent=1 // loop_header
      %s18 = sphi 0, %s22
      %p19 = scmp.ge.s32.totalorder %s18, 6
      %s26 = sphi 0, %s26
      %s28 = sphi 0, %s26
      %s29 = sphi 0, %s28
      %s43 = sphi 0, %s29
      %s49 = sphi 0, %s51
      %s52 = sphi 0, %s49
      %s53 = sphi 0, %s52
      %s69 = sphi 0, %s53
      %s75 = sphi 0, %s77
      %s78 = sphi 0, %s75
      %s79 = sphi 0, %s78
      %s95 = sphi 0, %s79
      %s101 = sphi 0, %s103
      %s104 = sphi 0, %s101
      %s105 = sphi 0, %s104
      %s121 = sphi 0, %s105
      %s127 = sphi 0, %s129
      %s130 = sphi 0, %s127
      %s131 = sphi 0, %s130
      %s147 = sphi 0, %s131
      %s151 = sphi 0, %s151
      %s153 = sphi 0, %s151
      %s154 = sphi 0, %s153
      %s168 = sphi 0, %s154
    $region4: #{tpu_custom_call.1} parent=1 // loop_header_branch
      %21 = sbr.rel (%p19) target = $region8
    $region5: #{tpu_custom_call.1} parent=1 // loop_body
      %s23 = ssub.s32 %s18, 1
      %s24 = ssub.s32 %s18, 2
      %s25 = sadd.s32 %s18, 1
      %s27 = sadd.s32 %s26, 1
      %p30 = scmp.eq.s32.totalorder %s18, 3
      %p31 = scmp.ne.s32.totalorder %s26, %s28
      %p32 = scmp.eq.s32.totalorder %s18, 0
      %p33 = por %p31, %p32
      %p34 = scmp.ne.s32.totalorder %s26, %s28
      %p35 = scmp.eq.s32.totalorder %s23, 3
      %p36 = por %p34, %p35
      %p37 = scmp.ne.s32.totalorder %s28, %s29
      %p38 = scmp.eq.s32.totalorder %s23, 0
      %p39 = por %p37, %p38
      %p40 = scmp.ne.s32.totalorder %s28, %s29
      %p41 = scmp.eq.s32.totalorder %s24, 3
      %p42 = por %p40, %p41
      %p44 = scmp.ne.s32.totalorder %s29, %s43
      %p45 = scmp.eq.s32.totalorder %s24, 0
      %p46 = por %p44, %p45
      %s47 = ssub.s32 %s18, %s25
      %p48 = scmp.eq.s32.totalorder %s47, 0
      %s50 = sadd.s32 %s49, 1
      %s51 = scalar_select %p48, %s49, %s50
      %p54 = pneg %p48
      %p55 = scmp.eq.s32.totalorder %s18, 3
      %p56 = por %p54, %p55
      %p57 = scmp.ne.s32.totalorder %s49, %s52
      %p58 = scmp.eq.s32.totalorder %s18, 0
      %p59 = por %p57, %p58
      %p60 = scmp.ne.s32.totalorder %s49, %s52
      %p61 = scmp.eq.s32.totalorder %s23, 3
      %p62 = por %p60, %p61
      %p63 = scmp.ne.s32.totalorder %s52, %s53
      %p64 = scmp.eq.s32.totalorder %s23, 0
      %p65 = por %p63, %p64
      %p66 = scmp.ne.s32.totalorder %s52, %s53
      %p67 = scmp.eq.s32.totalorder %s24, 3
      %p68 = por %p66, %p67
      %p70 = scmp.ne.s32.totalorder %s53, %s69
      %p71 = scmp.eq.s32.totalorder %s24, 0
      %p72 = por %p70, %p71
      %s73 = ssub.s32 %s18, %s25
      %p74 = scmp.eq.s32.totalorder %s73, 0
      %s76 = sadd.s32 %s75, 1
      %s77 = scalar_select %p74, %s75, %s76
      %p80 = pneg %p74
      %p81 = scmp.eq.s32.totalorder %s18, 3
      %p82 = por %p80, %p81
      %p83 = scmp.ne.s32.totalorder %s75, %s78
      %p84 = scmp.eq.s32.totalorder %s18, 0
      %p85 = por %p83, %p84
      %p86 = scmp.ne.s32.totalorder %s75, %s78
      %p87 = scmp.eq.s32.totalorder %s23, 3
      %p88 = por %p86, %p87
      %p89 = scmp.ne.s32.totalorder %s78, %s79
      %p90 = scmp.eq.s32.totalorder %s23, 0
      %p91 = por %p89, %p90
      %p92 = scmp.ne.s32.totalorder %s78, %s79
      %p93 = scmp.eq.s32.totalorder %s24, 3
      %p94 = por %p92, %p93
      %p96 = scmp.ne.s32.totalorder %s79, %s95
      %p97 = scmp.eq.s32.totalorder %s24, 0
      %p98 = por %p96, %p97
      %s99 = ssub.s32 %s18, %s25
      %p100 = scmp.eq.s32.totalorder %s99, 0
      %s102 = sadd.s32 %s101, 1
      %s103 = scalar_select %p100, %s101, %s102
      %p106 = pneg %p100
      %p107 = scmp.eq.s32.totalorder %s18, 3
      %p108 = por %p106, %p107
      %p109 = scmp.ne.s32.totalorder %s101, %s104
      %p110 = scmp.eq.s32.totalorder %s18, 0
      %p111 = por %p109, %p110
      %p112 = scmp.ne.s32.totalorder %s101, %s104
      %p113 = scmp.eq.s32.totalorder %s23, 3
      %p114 = por %p112, %p113
      %p115 = scmp.ne.s32.totalorder %s104, %s105
      %p116 = scmp.eq.s32.totalorder %s23, 0
      %p117 = por %p115, %p116
      %p118 = scmp.ne.s32.totalorder %s104, %s105
      %p119 = scmp.eq.s32.totalorder %s24, 3
      %p120 = por %p118, %p119
      %p122 = scmp.ne.s32.totalorder %s105, %s121
      %p123 = scmp.eq.s32.totalorder %s24, 0
      %p124 = por %p122, %p123
      %s125 = ssub.s32 %s18, %s25
      %p126 = scmp.eq.s32.totalorder %s125, 0
      %s128 = sadd.s32 %s127, 1
      %s129 = scalar_select %p126, %s127, %s128
      %p132 = pneg %p126
      %p133 = scmp.eq.s32.totalorder %s18, 3
      %p134 = por %p132, %p133
      %p135 = scmp.ne.s32.totalorder %s127, %s130
      %p136 = scmp.eq.s32.totalorder %s18, 0
      %p137 = por %p135, %p136
      %p138 = scmp.ne.s32.totalorder %s127, %s130
      %p139 = scmp.eq.s32.totalorder %s23, 3
      %p140 = por %p138, %p139
      %p141 = scmp.ne.s32.totalorder %s130, %s131
      %p142 = scmp.eq.s32.totalorder %s23, 0
      %p143 = por %p141, %p142
      %p144 = scmp.ne.s32.totalorder %s130, %s131
      %p145 = scmp.eq.s32.totalorder %s24, 3
      %p146 = por %p144, %p145
      %p148 = scmp.ne.s32.totalorder %s131, %s147
      %p149 = scmp.eq.s32.totalorder %s24, 0
      %p150 = por %p148, %p149
      %s152 = sadd.s32 %s151, 1
      %p155 = scmp.eq.s32.totalorder %s18, 3
      %p156 = scmp.ne.s32.totalorder %s151, %s153
      %p157 = scmp.eq.s32.totalorder %s18, 0
      %p158 = por %p156, %p157
      %p159 = scmp.ne.s32.totalorder %s151, %s153
      %p160 = scmp.eq.s32.totalorder %s23, 3
      %p161 = por %p159, %p160
      %p162 = scmp.ne.s32.totalorder %s153, %s154
      %p163 = scmp.eq.s32.totalorder %s23, 0
      %p164 = por %p162, %p163
      %p165 = scmp.ne.s32.totalorder %s153, %s154
      %p166 = scmp.eq.s32.totalorder %s24, 3
      %p167 = por %p165, %p166
      %p169 = scmp.ne.s32.totalorder %s154, %s168
      %p170 = scmp.eq.s32.totalorder %s24, 0
      %p171 = por %p169, %p170
      %p172 = scmp.le.s32.totalorder 1, %s18
      %p173 = scmp.lt.s32.totalorder %s18, 5
      %p174 = pnand %p172, %p173
      %p175 = pneg %p174
      // Predicated region
      $region9: #{tpu_custom_call.1} parent=5 // pred_check
        _
      $region10: #{tpu_custom_call.1} parent=5 // pred_check_branch
        %177 = sbr.rel (%p174) target = $region12
      $region11: #{tpu_custom_call.1} parent=5 // pred_region
        %s178 = ssub.s32 %s18, 1
        // Predicated region
        $region13: #{tpu_custom_call.1} parent=11 // pred_check
          %p179 = pneg %p39
        $region14: #{tpu_custom_call.1} parent=11 // pred_check_branch
          %181 = sbr.rel (%p179) target = $region16
        $region15: #{tpu_custom_call.1} parent=11 // pred_region
          _
        $region16: #{tpu_custom_call.1} parent=11 // pred_fallthru
          _
      $region12: #{tpu_custom_call.1} parent=5 // pred_fallthru
        _
      %p182 = scmp.lt.s32.totalorder %s18, 4
      // Predicated region
      $region17: #{tpu_custom_call.1} parent=5 // pred_check
        %p183 = pneg %p182
      $region18: #{tpu_custom_call.1} parent=5 // pred_check_branch
        %185 = sbr.rel (%p183) target = $region20
      $region19: #{tpu_custom_call.1} parent=5 // pred_region
        // Predicated region
        $region21: #{tpu_custom_call.1} parent=19 // pred_check
          %p186 = pneg %p59
        $region22: #{tpu_custom_call.1} parent=19 // pred_check_branch
          %188 = sbr.rel (%p186) target = $region24
        $region23: #{tpu_custom_call.1} parent=19 // pred_region
          %p189 = scmp.lt.s32.totalorder %s18, 3
          %s190 = scalar_select %p189, %s18, 3
          %s191 = smul.addr %s190, 4
          %s192 = smul.addr %s191, 8
          %s193 = scalar_lea.vmem %s1, %s192
        $region24: #{tpu_custom_call.1} parent=19 // pred_fallthru
          _
        // Predicated region
        $region25: #{tpu_custom_call.1} parent=19 // pred_check
          %p194 = pneg %p85
        $region26: #{tpu_custom_call.1} parent=19 // pred_check_branch
          %196 = sbr.rel (%p194) target = $region28
        $region27: #{tpu_custom_call.1} parent=19 // pred_region
          %s197 = sand.u32 %s75, 1
          %s198 = scalar_lea.sflag [#allocation3], %s197
          %s199 = sand.u32 %s75, 1
          %s200 = smul.addr %s199, 128
          %s201 = scalar_lea.vmem [#allocation2], %s200
          %203 = vsyncadd %s198, 0
          %s204 = smul.addr %s18, 16
          %s205 = smul.addr %s204, 8
          %s206 = scalar_lea.hbm %s2, %s205
          %s207 = sshll.u32 %s206, 4
          %s208 = int_to_ptr.hbm [resolvable:$true] %s207
          %s209 = sshll.u32 %s201, 4
          %s210 = int_to_ptr.vmem [resolvable:$true] %s209
          %215 = dma.hbm_to_vmem [thread:$0]  %s208, 2048, %s210, %s198, 128, 128, 8
        $region28: #{tpu_custom_call.1} parent=19 // pred_fallthru
          _
        // Predicated region
        $region29: #{tpu_custom_call.1} parent=19 // pred_check
          %p216 = pneg %p111
        $region30: #{tpu_custom_call.1} parent=19 // pred_check_branch
          %218 = sbr.rel (%p216) target = $region32
        $region31: #{tpu_custom_call.1} parent=19 // pred_region
          %s219 = sand.u32 %s101, 1
          %s220 = scalar_lea.sflag [#allocation6], %s219
          %s221 = sand.u32 %s101, 1
          %s222 = smul.addr %s221, 128
          %s223 = scalar_lea.vmem [#allocation5], %s222
          %225 = vsyncadd %s220, 0
          %s226 = smul.addr %s18, 16
          %s227 = smul.addr %s226, 8
          %s228 = scalar_lea.hbm %s3, %s227
          %s229 = sshll.u32 %s228, 4
          %s230 = int_to_ptr.hbm [resolvable:$true] %s229
          %s231 = sshll.u32 %s223, 4
          %s232 = int_to_ptr.vmem [resolvable:$true] %s231
          %237 = dma.hbm_to_vmem [thread:$0]  %s230, 2048, %s232, %s220, 128, 128, 8
        $region32: #{tpu_custom_call.1} parent=19 // pred_fallthru
          _
        // Predicated region
        $region33: #{tpu_custom_call.1} parent=19 // pred_check
          %p238 = pneg %p137
        $region34: #{tpu_custom_call.1} parent=19 // pred_check_branch
          %240 = sbr.rel (%p238) target = $region36
        $region35: #{tpu_custom_call.1} parent=19 // pred_region
          %p241 = scmp.lt.s32.totalorder %s18, 3
          %s242 = scalar_select %p241, %s18, 3
          %s243 = scalar_lea.vmem %s4, %s242
        $region36: #{tpu_custom_call.1} parent=19 // pred_fallthru
          _
      $region20: #{tpu_custom_call.1} parent=5 // pred_fallthru
        _
      %p244 = scmp.le.s32.totalorder 1, %s18
      %p245 = scmp.lt.s32.totalorder %s18, 5
      %p246 = pnand %p244, %p245
      %p247 = pneg %p246
      // Predicated region
      $region37: #{tpu_custom_call.1} parent=5 // pred_check
        _
      $region38: #{tpu_custom_call.1} parent=5 // pred_check_branch
        %249 = sbr.rel (%p246) target = $region40
      $region39: #{tpu_custom_call.1} parent=5 // pred_region
        %s250 = ssub.s32 %s18, 1
        %s251 = sand.u32 %s78, 1
        %s252 = scalar_lea.sflag [#allocation3], %s251
        %s253 = sand.u32 %s78, 1
        %s254 = smul.addr %s253, 128
        %s255 = scalar_lea.vmem [#allocation2], %s254
        // Predicated region
        $region41: #{tpu_custom_call.1} parent=39 // pred_check
          %p256 = pneg %p91
        $region42: #{tpu_custom_call.1} parent=39 // pred_check_branch
          %258 = sbr.rel (%p256) target = $region44
        $region43: #{tpu_custom_call.1} parent=39 // pred_region
          %260 = dma.done %s252, 2048
        $region44: #{tpu_custom_call.1} parent=39 // pred_fallthru
          _
        %s261 = sand.u32 %s104, 1
        %s262 = scalar_lea.sflag [#allocation6], %s261
        %s263 = sand.u32 %s104, 1
        %s264 = smul.addr %s263, 128
        %s265 = scalar_lea.vmem [#allocation5], %s264
        // Predicated region
        $region45: #{tpu_custom_call.1} parent=39 // pred_check
          %p266 = pneg %p117
        $region46: #{tpu_custom_call.1} parent=39 // pred_check_branch
          %268 = sbr.rel (%p266) target = $region48
        $region47: #{tpu_custom_call.1} parent=39 // pred_region
          %270 = dma.done %s262, 2048
        $region48: #{tpu_custom_call.1} parent=39 // pred_fallthru
          _
        %p271 = pneg %p39
        %p272 = pneg %p36
        %p273 = scmp.lt.s32.totalorder %s23, 3
        %s274 = scalar_select %p273, %s23, 3
        %s275 = smul.addr %s274, 4
        %s276 = smul.addr %s275, 8
        %s277 = scalar_lea.vmem %s1, %s276
        %p278 = pneg %p65
        %p279 = pneg %p62
        %s280 = sand.u32 %s78, 1
        %s281 = scalar_lea.sflag [#allocation3], %s280
        %s282 = sand.u32 %s78, 1
        %s283 = smul.addr %s282, 128
        %s284 = scalar_lea.vmem [#allocation2], %s283
        %p285 = pneg %p91
        %p286 = pneg %p88
        %s287 = sand.u32 %s104, 1
        %s288 = scalar_lea.sflag [#allocation6], %s287
        %s289 = sand.u32 %s104, 1
        %s290 = smul.addr %s289, 128
        %s291 = scalar_lea.vmem [#allocation5], %s290
        %p292 = pneg %p117
        %p293 = pneg %p114
        %p294 = scmp.lt.s32.totalorder %s23, 3
        %s295 = scalar_select %p294, %s23, 3
        %s296 = scalar_lea.vmem %s4, %s295
        %p297 = pneg %p143
        %p298 = pneg %p140
        %p299 = pneg %p164
        %p300 = pneg %p161
        %p301 = scmp.lt.s32.totalorder %s23, 3
        %s302 = scalar_select %p301, %s23, 3
        %s303 = smul.addr %s302, 4
        %s304 = smul.addr %s303, 8
        %s305 = scalar_lea.vmem %s1, %s304
        %p306 = scmp.lt.s32.totalorder %s23, 3
        %s307 = scalar_select %p306, %s23, 3
        %s308 = scalar_lea.vmem %s4, %s307
        %p309 = scmp.eq.s32.totalorder %s23, 0
        // Predicated region
        $region49: #{tpu_custom_call.1} parent=39 // pred_check
          %p310 = pneg %p309
        $region50: #{tpu_custom_call.1} parent=39 // pred_check_branch
          %312 = sbr.rel (%p310) target = $region52
        $region51: #{tpu_custom_call.1} parent=39 // pred_region
          %v313 = vld [vmem:[%s0] sm:$0xff]
          %v314 = vld [vmem:[%s0 + $0x8] sm:$0xff]
          %315 = vst [vmem:[#allocation7] sm:$0xff] %v313
          %316 = vst [vmem:[#allocation7 + $0x8] sm:$0xff] %v314
        $region52: #{tpu_custom_call.1} parent=39 // pred_fallthru
          _
        %v317 = vld [vmem:[%s305] sm:$0xff]
        %v318 = vld [vmem:[%s305 + $0x8] sm:$0xff]
        %v319 = vld [vmem:[%s305 + $0x10] sm:$0xff]
        %v320 = vld [vmem:[%s305 + $0x18] sm:$0xff]
        %v321 = vld [vmem:[#allocation7] sm:$0xff]
        %v322 = vld [vmem:[#allocation7 + $0x8] sm:$0xff]
        %vm323 = vcmask 130048
        %v325 = vsel %vm323, %v317, 0
        %v328 = vsel %vm323, %v318, 0
        %v331 = vsel %vm323, %v319, 0
        %v334 = vsel %vm323, %v320, 0
        %336 = vmatpush.msra.mxu0 0.0
        %337 = vmatpush.msra.mxu0 0.0
        %338 = vmatpush.msra.mxu0 0.0
        %339 = vmatpush.msra.mxu0 0.0
        %340 = vmatpush.msra.mxu0 0.0
        %341 = vmatpush.msra.mxu0 0.0
        %342 = vmatpush.msra.mxu0 0.0
        %343 = vmatpush.msra.mxu0 0.0
        %344 = vmatpush.msra.mxu0 0.0
        %345 = vmatpush.msra.mxu0 0.0
        %346 = vmatpush.msra.mxu0 0.0
        %347 = vmatpush.msra.mxu0 0.0
        %348 = vmatpush.msra.mxu0 0.0
        %349 = vmatpush.msra.mxu0 0.0
        %350 = vmatpush.msra.mxu0 %v322
        %351 = vmatpush.msra.mxu0 %v321
        %352 = vmatmul.f32.gmra.mxu0 %v325
        %v353 = vpop.f32.mrf.mxu0
        %v354 = vadd.f32 0.0, %v353
        %355 = vmatmul.f32.gmra.mxu0 %v328
        %v356 = vpop.f32.mrf.mxu0
        %v357 = vadd.f32 0.0, %v356
        %358 = vmatmul.f32.gmra.mxu0 %v331
        %v359 = vpop.f32.mrf.mxu0
        %v360 = vadd.f32 0.0, %v359
        %361 = vmatmul.f32.gmra.mxu0 %v334
        %v362 = vpop.f32.mrf.mxu0
        %v363 = vadd.f32 0.0, %v362
        %364 = vdwg.mxu0
        %v365 = vld [vmem:[%s255] sm:$0xff]
        %v366 = vld [vmem:[%s255 + $0x8] sm:$0xff]
        %v367 = vld [vmem:[%s255 + $0x10] sm:$0xff]
        %v368 = vld [vmem:[%s255 + $0x18] sm:$0xff]
        %v369 = vld [vmem:[%s255 + $0x20] sm:$0xff]
        %v370 = vld [vmem:[%s255 + $0x28] sm:$0xff]
        %v371 = vld [vmem:[%s255 + $0x30] sm:$0xff]
        %v372 = vld [vmem:[%s255 + $0x38] sm:$0xff]
        %v373 = vld [vmem:[%s255 + $0x40] sm:$0xff]
        %v374 = vld [vmem:[%s255 + $0x48] sm:$0xff]
        %v375 = vld [vmem:[%s255 + $0x50] sm:$0xff]
        %v376 = vld [vmem:[%s255 + $0x58] sm:$0xff]
        %v377 = vld [vmem:[%s255 + $0x60] sm:$0xff]
        %v378 = vld [vmem:[%s255 + $0x68] sm:$0xff]
        %v379 = vld [vmem:[%s255 + $0x70] sm:$0xff]
        %v380 = vld [vmem:[%s255 + $0x78] sm:$0xff]
        %381 = vmatpush.msra.mxu0 %v380
        %382 = vmatpush.msra.mxu0 %v379
        %383 = vmatpush.msra.mxu0 %v378
        %384 = vmatpush.msra.mxu0 %v377
        %385 = vmatpush.msra.mxu0 %v376
        %386 = vmatpush.msra.mxu0 %v375
        %387 = vmatpush.msra.mxu0 %v374
        %388 = vmatpush.msra.mxu0 %v373
        %389 = vmatpush.msra.mxu0 %v372
        %390 = vmatpush.msra.mxu0 %v371
        %391 = vmatpush.msra.mxu0 %v370
        %392 = vmatpush.msra.mxu0 %v369
        %393 = vmatpush.msra.mxu0 %v368
        %394 = vmatpush.msra.mxu0 %v367
        %395 = vmatpush.msra.mxu0 %v366
        %396 = vmatpush.msra.mxu0 %v365
        %397 = vmatmul.f32.gmra.mxu0 %v354
        %v398 = vpop.f32.mrf.mxu0
        %v399 = vadd.f32 0.0, %v398
        %400 = vmatmul.f32.gmra.mxu0 %v357
        %v401 = vpop.f32.mrf.mxu0
        %v402 = vadd.f32 0.0, %v401
        %403 = vdwg.mxu0
        %v404 = vld [vmem:[%s265] sm:$0xff]
        %v405 = vld [vmem:[%s265 + $0x8] sm:$0xff]
        %v406 = vld [vmem:[%s265 + $0x10] sm:$0xff]
        %v407 = vld [vmem:[%s265 + $0x18] sm:$0xff]
        %v408 = vld [vmem:[%s265 + $0x20] sm:$0xff]
        %v409 = vld [vmem:[%s265 + $0x28] sm:$0xff]
        %v410 = vld [vmem:[%s265 + $0x30] sm:$0xff]
        %v411 = vld [vmem:[%s265 + $0x38] sm:$0xff]
        %v412 = vld [vmem:[%s265 + $0x40] sm:$0xff]
        %v413 = vld [vmem:[%s265 + $0x48] sm:$0xff]
        %v414 = vld [vmem:[%s265 + $0x50] sm:$0xff]
        %v415 = vld [vmem:[%s265 + $0x58] sm:$0xff]
        %v416 = vld [vmem:[%s265 + $0x60] sm:$0xff]
        %v417 = vld [vmem:[%s265 + $0x68] sm:$0xff]
        %v418 = vld [vmem:[%s265 + $0x70] sm:$0xff]
        %v419 = vld [vmem:[%s265 + $0x78] sm:$0xff]
        %420 = vmatpush.msra.mxu0 %v419
        %421 = vmatpush.msra.mxu0 %v418
        %422 = vmatpush.msra.mxu0 %v417
        %423 = vmatpush.msra.mxu0 %v416
        %424 = vmatpush.msra.mxu0 %v415
        %425 = vmatpush.msra.mxu0 %v414
        %426 = vmatpush.msra.mxu0 %v413
        %427 = vmatpush.msra.mxu0 %v412
        %428 = vmatpush.msra.mxu0 %v411
        %429 = vmatpush.msra.mxu0 %v410
        %430 = vmatpush.msra.mxu0 %v409
        %431 = vmatpush.msra.mxu0 %v408
        %432 = vmatpush.msra.mxu0 %v407
        %433 = vmatpush.msra.mxu0 %v406
        %434 = vmatpush.msra.mxu0 %v405
        %435 = vmatpush.msra.mxu0 %v404
        %436 = vmatmul.f32.gmra.mxu0 %v360
        %v437 = vpop.f32.mrf.mxu0
        %v438 = vadd.f32 0.0, %v437
        %439 = vmatmul.f32.gmra.mxu0 %v363
        %v440 = vpop.f32.mrf.mxu0
        %v441 = vadd.f32 0.0, %v440
        %442 = vdwg.mxu0
        %v443 = vsub.f32 %v399, %v438
        %v444 = vsub.f32 %v402, %v441
        %v445 = vld [vmem:[%s308] sm:$0x1]
        %v447 = vperm.slane %v445, 0
        %v449 = vadd.f32 %v443, %v447
        %v450 = vadd.f32 %v444, %v447
        %451 = vst [vmem:[#allocation7] sm:$0xff] %v449
        %452 = vst [vmem:[#allocation7 + $0x8] sm:$0xff] %v450
        // Predicated region
        $region53: #{tpu_custom_call.1} parent=39 // pred_check
          %p453 = pneg %p161
        $region54: #{tpu_custom_call.1} parent=39 // pred_check_branch
          %455 = sbr.rel (%p453) target = $region56
        $region55: #{tpu_custom_call.1} parent=39 // pred_region
          %457 = vsyncadd [#allocation4], 0
          %s458 = sshll.u32 [#allocation7], 4
          %s459 = int_to_ptr.vmem [resolvable:$true] %s458
          %s460 = sshll.u32 %s5, 4
          %s461 = int_to_ptr.hbm [resolvable:$true] %s460
          %466 = dma.vmem_to_hbm [thread:$0]  %s459, 256, %s461, [#allocation4], 128, 128, 8
        $region56: #{tpu_custom_call.1} parent=39 // pred_fallthru
          _
        // Predicated region
        $region57: #{tpu_custom_call.1} parent=39 // pred_check
          %p467 = pneg %p161
        $region58: #{tpu_custom_call.1} parent=39 // pred_check_branch
          %469 = sbr.rel (%p467) target = $region60
        $region59: #{tpu_custom_call.1} parent=39 // pred_region
          %471 = dma.done [#allocation4], 256
        $region60: #{tpu_custom_call.1} parent=39 // pred_fallthru
          _
      $region40: #{tpu_custom_call.1} parent=5 // pred_fallthru
        _
      %p472 = scmp.le.s32.totalorder 2, %s18
      // Predicated region
      $region61: #{tpu_custom_call.1} parent=5 // pred_check
        %p473 = pneg %p472
      $region62: #{tpu_custom_call.1} parent=5 // pred_check_branch
        %475 = sbr.rel (%p473) target = $region64
      $region63: #{tpu_custom_call.1} parent=5 // pred_region
        %s476 = ssub.s32 %s18, 2
      $region64: #{tpu_custom_call.1} parent=5 // pred_fallthru
        _
    $region6: #{tpu_custom_call.1} parent=1 // loop_footer
      %s22 = sadd.s32 1, %s18
    $region7: #{tpu_custom_call.1} parent=1 // loop_footer_branch
      %17 = sbr.rel target = $region3
    $region8: #{tpu_custom_call.1} parent=1 // loop_exit
      _
    %477 = vsyncpa [#allocation3], 1
    %s478 = scalar_lea.sflag [#allocation3], 1
    %479 = vsyncpa %s478, 1
    %480 = vsyncpa [#allocation6], 1
    %s481 = scalar_lea.sflag [#allocation6], 1
    %482 = vsyncpa %s481, 1
    %483 = vsyncpa [#allocation4], 1
    %s484 = scalar_lea.sflag [#allocation4], 1
    %485 = vsyncpa %s484, 1

</llo_original>
